<compile_context>
chip_gen: v5e
topology: v5e:2x2
jax: 0.10.0
libtpu: 0.0.40
codegen_flags: <defaults>
</compile_context>

<pallas_src>
import functools

import jax
import jax.numpy as jnp
from jax.experimental import pallas as pl
from jax.experimental.pallas import tpu as pltpu

LANE = 128
_FC1_VPU_MAX_S = 16  # at or below this contraction depth, fc1 runs on the VPU


def _round_up(x, m):
    return (x + m - 1) // m * m


def qnet_kernel(x_ref, w1_ref, b1_ref, w2_ref, b2_ref, w3_ref, b3_ref, out_ref):
    """Fused 3-layer MLP on one (TB, S) batch tile."""
    # ---- fc1 + ReLU ----
    if w1_ref.dtype == jnp.float32:
        # Tiny contraction depth: S broadcast multiply-adds on the VPU (f32),
        # freeing the MXU pushes a K=S matmul would have cost.
        x = x_ref[...]                                   # (TB, S) f32
        w1 = w1_ref[...]                                 # (S, H_pad) f32
        h1 = jnp.broadcast_to(b1_ref[...], (x.shape[0], w1.shape[1]))
        for s in range(w1.shape[0]):                     # static, small unroll
            h1 = h1 + x[:, s:s + 1] * w1[s:s + 1, :]
        h1 = jnp.maximum(h1, 0.0)
    else:
        # Fallback for larger state_dim: MXU path, cast x in-kernel (rides VPU).
        h1 = jnp.dot(x_ref[...].astype(jnp.bfloat16), w1_ref[...],
                     preferred_element_type=jnp.float32)
        h1 = jnp.maximum(h1 + b1_ref[...], 0.0)

    # ---- fc2 + ReLU (MXU, bf16 operands / f32 accumulate) ----
    h2 = jnp.dot(h1.astype(jnp.bfloat16), w2_ref[...],
                 preferred_element_type=jnp.float32)
    h2 = jnp.maximum(h2 + b2_ref[...], 0.0)

    # ---- fc3 (MXU, no activation); output block is (TB, A), unpadded ----
    out_ref[...] = (
        jnp.dot(h2.astype(jnp.bfloat16), w3_ref[...],
                preferred_element_type=jnp.float32)
        + b3_ref[...]
    )


def pack_params(params):
    """Pad/cast parameters once (hoisted out of the per-call forward path).

    Hidden dim is padded to 128 lanes (padded columns are provably zero: zero
    weights + zero bias + ReLU). The action dim is NOT padded, so the kernel
    output stays (B, A) and HBM writeback is not amplified.
    """
    S, H = params["w1"].shape
    A = params["w3"].shape[1]
    H_pad = _round_up(H, LANE)

    def pad2(a, rows, cols, dtype):
        return jnp.pad(a, ((0, rows - a.shape[0]),
                           (0, cols - a.shape[1]))).astype(dtype)

    w1_dtype = jnp.float32 if S <= _FC1_VPU_MAX_S else jnp.bfloat16
    return {
        "w1": pad2(params["w1"], S, H_pad, w1_dtype),
        "b1": pad2(params["b1"], 1, H_pad, jnp.float32),
        "w2": pad2(params["w2"], H_pad, H_pad, jnp.bfloat16),
        "b2": pad2(params["b2"], 1, H_pad, jnp.float32),
        "w3": pad2(params["w3"], H_pad, A, jnp.bfloat16),
        "b3": pad2(params["b3"], 1, A, jnp.float32),
    }


@functools.partial(jax.jit, static_argnames=("tb",))
def qnetwork_forward(x, packed, tb=2048):
    """3-layer MLP Q-network forward pass.

    x: [B, state_dim] float32 (native dtype; no wrapper-side cast)
    packed: output of pack_params()
    Returns: [B, action_dim] float32
    """
    B, S = x.shape
    A = packed["w3"].shape[1]

    # Batch tile: multiple of 8 (sublane), capped by padded batch. Pick `tb`
    # to divide the expected batch to avoid over-padding; keep >= 2 grid steps
    # on v7x so both TensorCores get work.
    TB = min(_round_up(tb, 8), _round_up(B, 8))
    B_pad = _round_up(B, TB)
    x_p = x if B_pad == B else jnp.pad(x, ((0, B_pad - B), (0, 0)))

    grid = (B_pad // TB,)
    const = lambda shape: pl.BlockSpec(shape, lambda i: (0, 0))  # VMEM-resident

    out = pl.pallas_call(
        qnet_kernel,
        out_shape=jax.ShapeDtypeStruct((B_pad, A), jnp.float32),
        grid=grid,
        in_specs=[
            pl.BlockSpec((TB, S), lambda i: (i, 0)),   # x tile streams per step
            const(packed["w1"].shape),                 # w1
            const(packed["b1"].shape),                 # b1
            const(packed["w2"].shape),                 # w2
            const(packed["b2"].shape),                 # b2
            const(packed["w3"].shape),                 # w3 (unpadded N = A)
            const(packed["b3"].shape),                 # b3
        ],
        out_specs=pl.BlockSpec((TB, A), lambda i: (i, 0)),
        compiler_params=pltpu.CompilerParams(
            dimension_semantics=("parallel",),
            vmem_limit_bytes=32 * 1024 * 1024,  # explicit: safe on v7x's 64 MiB
        ),
    )(x_p, packed["w1"], packed["b1"], packed["w2"], packed["b2"],
      packed["w3"], packed["b3"])

    return out if B_pad == B else out[:B]


def init_params(key, state_dim, action_dim, hidden_dim=64):
    """Deterministic synthetic parameters (Kaiming-uniform-ish like torch defaults)."""
    ks = jax.random.split(key, 6)

    def linear(kw, kb, fan_in, fan_out):
        bound = 1.0 / jnp.sqrt(jnp.float32(fan_in))
        w = jax.random.uniform(kw, (fan_in, fan_out), jnp.float32, -bound, bound)
        b = jax.random.uniform(kb, (1, fan_out), jnp.float32, -bound, bound)
        return w, b

    w1, b1 = linear(ks[0], ks[1], state_dim, hidden_dim)
    w2, b2 = linear(ks[2], ks[3], hidden_dim, hidden_dim)
    w3, b3 = linear(ks[4], ks[5], hidden_dim, action_dim)
    return {"w1": w1, "b1": b1, "w2": w2, "b2": b2, "w3": w3, "b3": b3}


def reference_forward_kernel_numerics(x, p):
    """Mirror the kernel's numerics: fc1 in f32, fc2/fc3 bf16 operands + f32 accumulate."""
    bdot = lambda a, b: jnp.dot(a.astype(jnp.bfloat16), b.astype(jnp.bfloat16),
                                preferred_element_type=jnp.float32)
    h1 = jnp.maximum(x @ p["w1"] + p["b1"], 0.0)
    h2 = jnp.maximum(bdot(h1, p["w2"]) + p["b2"], 0.0)
    return bdot(h2, p["w3"]) + p["b3"]


def reference_forward_f32(x, p):
    h1 = jnp.maximum(x @ p["w1"] + p["b1"], 0.0)
    h2 = jnp.maximum(h1 @ p["w2"] + p["b2"], 0.0)
    return h2 @ p["w3"] + p["b3"]


if __name__ == "__main__":
    state_dim, action_dim, hidden_dim = 8, 4, 64
    batch = 16  # small test; tb=8 forces a 2-step grid (exercises tiling / v7x sharding)

    key = jax.random.PRNGKey(0)
    k_x, k_p = jax.random.split(key)
    x = jax.random.normal(k_x, (batch, state_dim), jnp.float32)
    params = init_params(k_p, state_dim, action_dim, hidden_dim)
    packed = pack_params(params)  # pad/cast once, outside the per-call path

    q = qnetwork_forward(x, packed, tb=8)
    q = jax.block_until_ready(q)

    q_ref_mixed = reference_forward_kernel_numerics(x, params)
    q_ref_f32 = reference_forward_f32(x, params)

    assert q.shape == (batch, action_dim)
    # Kernel numerics should match the mixed-precision reference closely
    # (small f32 summation-order differences only).
    assert jnp.allclose(q, q_ref_mixed, atol=2e-3, rtol=2e-3)
    # And stay near the full-f32 reference (bf16 rounding only).
    assert jnp.allclose(q, q_ref_f32, atol=5e-2, rtol=5e-2)

    print("KERNEL_OK")
</pallas_src>

<mosaic_0001>
module attributes {stable_mosaic.version = 11 : i64} {
  func.func @qnet_kernel(%arg0: i32, %arg1: memref<8x8xf32, #tpu.memory_space<vmem>>, %arg2: memref<8x128xf32, #tpu.memory_space<vmem>>, %arg3: memref<1x128xf32, #tpu.memory_space<vmem>>, %arg4: memref<128x128xbf16, #tpu.memory_space<vmem>>, %arg5: memref<1x128xf32, #tpu.memory_space<vmem>>, %arg6: memref<128x4xbf16, #tpu.memory_space<vmem>>, %arg7: memref<1x4xf32, #tpu.memory_space<vmem>>, %arg8: memref<8x4xf32, #tpu.memory_space<vmem>>) attributes {dimension_semantics = [#tpu.dimension_semantics<parallel>], iteration_bounds = array<i64: 2>, scalar_prefetch = 0 : i64, scratch_operands = 0 : i64, tpu.core_type = #tpu.core_type<tc>, window_params = [{transform_indices = @transform_0, window_bounds = array<i64: 8, 8>}, {pipeline_mode = #tpu.pipeline_mode<synchronous>, transform_indices = @transform_1, window_bounds = array<i64: 8, 128>}, {pipeline_mode = #tpu.pipeline_mode<synchronous>, transform_indices = @transform_2, window_bounds = array<i64: 1, 128>}, {pipeline_mode = #tpu.pipeline_mode<synchronous>, transform_indices = @transform_3, window_bounds = array<i64: 128, 128>}, {pipeline_mode = #tpu.pipeline_mode<synchronous>, transform_indices = @transform_4, window_bounds = array<i64: 1, 128>}, {pipeline_mode = #tpu.pipeline_mode<synchronous>, transform_indices = @transform_5, window_bounds = array<i64: 128, 4>}, {pipeline_mode = #tpu.pipeline_mode<synchronous>, transform_indices = @transform_6, window_bounds = array<i64: 1, 4>}, {transform_indices = @transform_7, window_bounds = array<i64: 8, 4>}]} {
    %c0 = arith.constant 0 : index
    %c0_0 = arith.constant 0 : index
    %0 = vector.load %arg1[%c0, %c0_0] : memref<8x8xf32, #tpu.memory_space<vmem>>, vector<8x8xf32>
    %c0_1 = arith.constant 0 : index
    %c0_2 = arith.constant 0 : index
    %1 = vector.load %arg2[%c0_1, %c0_2] : memref<8x128xf32, #tpu.memory_space<vmem>>, vector<8x128xf32>
    %c0_3 = arith.constant 0 : index
    %c0_4 = arith.constant 0 : index
    %2 = vector.load %arg3[%c0_3, %c0_4] : memref<1x128xf32, #tpu.memory_space<vmem>>, vector<1x128xf32>
    %3 = vector.shape_cast %2 : vector<1x128xf32> to vector<1x128xf32>
    %4 = vector.broadcast %3 : vector<1x128xf32> to vector<8x128xf32>
    %5 = vector.extract_strided_slice %0 {offsets = [0, 0], sizes = [8, 1], strides = [1, 1]} : vector<8x8xf32> to vector<8x1xf32>
    %6 = vector.extract_strided_slice %1 {offsets = [0, 0], sizes = [1, 128], strides = [1, 1]} : vector<8x128xf32> to vector<1x128xf32>
    %7 = vector.broadcast %5 : vector<8x1xf32> to vector<8x128xf32>
    %8 = vector.broadcast %6 : vector<1x128xf32> to vector<8x128xf32>
    %9 = arith.mulf %7, %8 : vector<8x128xf32>
    %10 = arith.addf %4, %9 : vector<8x128xf32>
    %11 = vector.extract_strided_slice %0 {offsets = [0, 1], sizes = [8, 1], strides = [1, 1]} : vector<8x8xf32> to vector<8x1xf32>
    %12 = vector.extract_strided_slice %1 {offsets = [1, 0], sizes = [1, 128], strides = [1, 1]} : vector<8x128xf32> to vector<1x128xf32>
    %13 = vector.broadcast %11 : vector<8x1xf32> to vector<8x128xf32>
    %14 = vector.broadcast %12 : vector<1x128xf32> to vector<8x128xf32>
    %15 = arith.mulf %13, %14 : vector<8x128xf32>
    %16 = arith.addf %10, %15 : vector<8x128xf32>
    %17 = vector.extract_strided_slice %0 {offsets = [0, 2], sizes = [8, 1], strides = [1, 1]} : vector<8x8xf32> to vector<8x1xf32>
    %18 = vector.extract_strided_slice %1 {offsets = [2, 0], sizes = [1, 128], strides = [1, 1]} : vector<8x128xf32> to vector<1x128xf32>
    %19 = vector.broadcast %17 : vector<8x1xf32> to vector<8x128xf32>
    %20 = vector.broadcast %18 : vector<1x128xf32> to vector<8x128xf32>
    %21 = arith.mulf %19, %20 : vector<8x128xf32>
    %22 = arith.addf %16, %21 : vector<8x128xf32>
    %23 = vector.extract_strided_slice %0 {offsets = [0, 3], sizes = [8, 1], strides = [1, 1]} : vector<8x8xf32> to vector<8x1xf32>
    %24 = vector.extract_strided_slice %1 {offsets = [3, 0], sizes = [1, 128], strides = [1, 1]} : vector<8x128xf32> to vector<1x128xf32>
    %25 = vector.broadcast %23 : vector<8x1xf32> to vector<8x128xf32>
    %26 = vector.broadcast %24 : vector<1x128xf32> to vector<8x128xf32>
    %27 = arith.mulf %25, %26 : vector<8x128xf32>
    %28 = arith.addf %22, %27 : vector<8x128xf32>
    %29 = vector.extract_strided_slice %0 {offsets = [0, 4], sizes = [8, 1], strides = [1, 1]} : vector<8x8xf32> to vector<8x1xf32>
    %30 = vector.extract_strided_slice %1 {offsets = [4, 0], sizes = [1, 128], strides = [1, 1]} : vector<8x128xf32> to vector<1x128xf32>
    %31 = vector.broadcast %29 : vector<8x1xf32> to vector<8x128xf32>
    %32 = vector.broadcast %30 : vector<1x128xf32> to vector<8x128xf32>
    %33 = arith.mulf %31, %32 : vector<8x128xf32>
    %34 = arith.addf %28, %33 : vector<8x128xf32>
    %35 = vector.extract_strided_slice %0 {offsets = [0, 5], sizes = [8, 1], strides = [1, 1]} : vector<8x8xf32> to vector<8x1xf32>
    %36 = vector.extract_strided_slice %1 {offsets = [5, 0], sizes = [1, 128], strides = [1, 1]} : vector<8x128xf32> to vector<1x128xf32>
    %37 = vector.broadcast %35 : vector<8x1xf32> to vector<8x128xf32>
    %38 = vector.broadcast %36 : vector<1x128xf32> to vector<8x128xf32>
    %39 = arith.mulf %37, %38 : vector<8x128xf32>
    %40 = arith.addf %34, %39 : vector<8x128xf32>
    %41 = vector.extract_strided_slice %0 {offsets = [0, 6], sizes = [8, 1], strides = [1, 1]} : vector<8x8xf32> to vector<8x1xf32>
    %42 = vector.extract_strided_slice %1 {offsets = [6, 0], sizes = [1, 128], strides = [1, 1]} : vector<8x128xf32> to vector<1x128xf32>
    %43 = vector.broadcast %41 : vector<8x1xf32> to vector<8x128xf32>
    %44 = vector.broadcast %42 : vector<1x128xf32> to vector<8x128xf32>
    %45 = arith.mulf %43, %44 : vector<8x128xf32>
    %46 = arith.addf %40, %45 : vector<8x128xf32>
    %47 = vector.extract_strided_slice %0 {offsets = [0, 7], sizes = [8, 1], strides = [1, 1]} : vector<8x8xf32> to vector<8x1xf32>
    %48 = vector.extract_strided_slice %1 {offsets = [7, 0], sizes = [1, 128], strides = [1, 1]} : vector<8x128xf32> to vector<1x128xf32>
    %49 = vector.broadcast %47 : vector<8x1xf32> to vector<8x128xf32>
    %50 = vector.broadcast %48 : vector<1x128xf32> to vector<8x128xf32>
    %51 = arith.mulf %49, %50 : vector<8x128xf32>
    %52 = arith.addf %46, %51 : vector<8x128xf32>
    %cst = arith.constant 0.000000e+00 : f32
    %53 = vector.broadcast %cst : f32 to vector<8x128xf32>
    %54 = arith.maximumf %52, %53 : vector<8x128xf32>
    %55 = arith.truncf %54 : vector<8x128xf32> to vector<8x128xbf16>
    %c0_5 = arith.constant 0 : index
    %c0_6 = arith.constant 0 : index
    %56 = vector.load %arg4[%c0_5, %c0_6] : memref<128x128xbf16, #tpu.memory_space<vmem>>, vector<128x128xbf16>
    %cst_7 = arith.constant dense<0.000000e+00> : vector<8x128xf32>
    %57 = tpu.matmul %55, %56, %cst_7 {dimension_numbers = #tpu.dot_dimension_numbers<[1], [0], [0], [1], [0, 0, 1, 1], [], []>} : vector<8x128xbf16>, vector<128x128xbf16>, vector<8x128xf32> -> vector<8x128xf32>
    %c0_8 = arith.constant 0 : index
    %c0_9 = arith.constant 0 : index
    %58 = vector.load %arg5[%c0_8, %c0_9] : memref<1x128xf32, #tpu.memory_space<vmem>>, vector<1x128xf32>
    %59 = vector.broadcast %58 : vector<1x128xf32> to vector<8x128xf32>
    %60 = arith.addf %57, %59 : vector<8x128xf32>
    %cst_10 = arith.constant 0.000000e+00 : f32
    %61 = vector.broadcast %cst_10 : f32 to vector<8x128xf32>
    %62 = arith.maximumf %60, %61 : vector<8x128xf32>
    %63 = arith.truncf %62 : vector<8x128xf32> to vector<8x128xbf16>
    %c0_11 = arith.constant 0 : index
    %c0_12 = arith.constant 0 : index
    %64 = vector.load %arg6[%c0_11, %c0_12] : memref<128x4xbf16, #tpu.memory_space<vmem>>, vector<128x4xbf16>
    %cst_13 = arith.constant dense<0.000000e+00> : vector<8x4xf32>
    %65 = tpu.matmul %63, %64, %cst_13 {dimension_numbers = #tpu.dot_dimension_numbers<[1], [0], [0], [1], [0, 0, 1, 1], [], []>} : vector<8x128xbf16>, vector<128x4xbf16>, vector<8x4xf32> -> vector<8x4xf32>
    %c0_14 = arith.constant 0 : index
    %c0_15 = arith.constant 0 : index
    %66 = vector.load %arg7[%c0_14, %c0_15] : memref<1x4xf32, #tpu.memory_space<vmem>>, vector<1x4xf32>
    %67 = vector.broadcast %66 : vector<1x4xf32> to vector<8x4xf32>
    %68 = arith.addf %65, %67 : vector<8x4xf32>
    %c0_16 = arith.constant 0 : index
    %c0_17 = arith.constant 0 : index
    %69 = vector.load %arg8[%c0_16, %c0_17] : memref<8x4xf32, #tpu.memory_space<vmem>>, vector<8x4xf32>
    tpu.vector_store %arg8[%c0_16, %c0_17], %68 {strides = array<i32>} : memref<8x4xf32, #tpu.memory_space<vmem>>, vector<8x4xf32>,
    return
  }
  func.func @transform_0(%arg0: i32) -> (i32, i32) {
    %c0_i32 = arith.constant 0 : i32
    %c0_i32_0 = arith.constant 0 : i32
    return %arg0, %c0_i32 : i32, i32
  }
  func.func @transform_1(%arg0: i32) -> (i32, i32) {
    %c0_i32 = arith.constant 0 : i32
    %c0_i32_0 = arith.constant 0 : i32
    %c0_i32_1 = arith.constant 0 : i32
    return %c0_i32, %c0_i32_0 : i32, i32
  }
  func.func @transform_2(%arg0: i32) -> (i32, i32) {
    %c0_i32 = arith.constant 0 : i32
    %c0_i32_0 = arith.constant 0 : i32
    %c0_i32_1 = arith.constant 0 : i32
    return %c0_i32, %c0_i32_0 : i32, i32
  }
  func.func @transform_3(%arg0: i32) -> (i32, i32) {
    %c0_i32 = arith.constant 0 : i32
    %c0_i32_0 = arith.constant 0 : i32
    %c0_i32_1 = arith.constant 0 : i32
    return %c0_i32, %c0_i32_0 : i32, i32
  }
  func.func @transform_4(%arg0: i32) -> (i32, i32) {
    %c0_i32 = arith.constant 0 : i32
    %c0_i32_0 = arith.constant 0 : i32
    %c0_i32_1 = arith.constant 0 : i32
    return %c0_i32, %c0_i32_0 : i32, i32
  }
  func.func @transform_5(%arg0: i32) -> (i32, i32) {
    %c0_i32 = arith.constant 0 : i32
    %c0_i32_0 = arith.constant 0 : i32
    %c0_i32_1 = arith.constant 0 : i32
    return %c0_i32, %c0_i32_0 : i32, i32
  }
  func.func @transform_6(%arg0: i32) -> (i32, i32) {
    %c0_i32 = arith.constant 0 : i32
    %c0_i32_0 = arith.constant 0 : i32
    %c0_i32_1 = arith.constant 0 : i32
    return %c0_i32, %c0_i32_0 : i32, i32
  }
  func.func @transform_7(%arg0: i32) -> (i32, i32) {
    %c0_i32 = arith.constant 0 : i32
    %c0_i32_0 = arith.constant 0 : i32
    return %arg0, %c0_i32 : i32, i32
  }
}

</mosaic_0001>

<llo_original>
// kernel: qnetwork_forward.1
$region0: #{qnetwork_forward.1}
  #allocation0 [shape = 'u32[]', space=smem, size = 0x4, offset = 0x4, fixed_abs, tag = 'smem constant byte address 0x4 - core index']
  #allocation1 [shape = 'u32[72,128]{1,0:T(1,128)}', space=vmem, size = 0x9000, scoped, tag = 'internal scratch']
  %s0 = inlined_call_operand.vmem [shape: f32[16,8], index: 0, kind: input, shape index: {}]
  %s1 = inlined_call_operand.vmem [shape: f32[8,128], index: 1, kind: input, shape index: {}]
  %s2 = inlined_call_operand.vmem [shape: f32[1,128], index: 2, kind: input, shape index: {}]
  %s3 = inlined_call_operand.vmem [shape: bf16[128,128], index: 3, kind: input, shape index: {}]
  %s4 = inlined_call_operand.vmem [shape: f32[1,128], index: 4, kind: input, shape index: {}]
  %s5 = inlined_call_operand.vmem [shape: bf16[128,4], index: 5, kind: input, shape index: {}]
  %s6 = inlined_call_operand.vmem [shape: f32[1,4], index: 6, kind: input, shape index: {}]
  %s7 = inlined_call_operand.vmem [shape: f32[16,4], index: 7, kind: output, shape index: {}]
  %s8 = sld [smem:[#allocation0]]
  $region61: #{qnetwork_forward.1} parent=0
    _
  %s10 = ssub.s32 1, %s8
  %s11 = scalar_select 0, %s10, %s8
  loop: start=0, step=1, limit=4
  $region2: #{qnetwork_forward.1} parent=0 // loop_pre_header
    _
  $region3: #{qnetwork_forward.1} parent=0 // loop_header
    %s13 = sphi 0, %s17
    %p14 = scmp.ge.s32.totalorder %s13, 4
    %s23 = sphi 0, %s25
    %s26 = sphi 0, %s23
    %s27 = sphi 0, %s26
    %s43 = sphi 0, %s27
    %s47 = sphi 0, %s47
    %s49 = sphi 0, %s47
    %s50 = sphi 0, %s49
    %s64 = sphi 0, %s50
    %s68 = sphi 0, %s68
    %s70 = sphi 0, %s68
    %s71 = sphi 0, %s70
    %s85 = sphi 0, %s71
    %s89 = sphi 0, %s89
    %s91 = sphi 0, %s89
    %s92 = sphi 0, %s91
    %s106 = sphi 0, %s92
    %s110 = sphi 0, %s110
    %s112 = sphi 0, %s110
    %s113 = sphi 0, %s112
    %s127 = sphi 0, %s113
    %s131 = sphi 0, %s131
    %s133 = sphi 0, %s131
    %s134 = sphi 0, %s133
    %s148 = sphi 0, %s134
    %s152 = sphi 0, %s152
    %s154 = sphi 0, %s152
    %s155 = sphi 0, %s154
    %s169 = sphi 0, %s155
    %s175 = sphi 0, %s177
    %s178 = sphi 0, %s175
    %s179 = sphi 0, %s178
    %s195 = sphi 0, %s179
  $region4: #{qnetwork_forward.1} parent=0 // loop_header_branch
    %16 = sbr.rel (%p14) target = $region8
  $region5: #{qnetwork_forward.1} parent=0 // loop_body
    %s18 = ssub.s32 %s13, 1
    %s19 = ssub.s32 %s13, 2
    %s20 = sadd.s32 %s13, 1
    %s21 = ssub.s32 %s13, %s20
    %p22 = scmp.eq.s32.totalorder %s21, 0
    %s24 = sadd.s32 %s23, 1
    %s25 = scalar_select %p22, %s23, %s24
    %p28 = pneg %p22
    %p29 = scmp.eq.s32.totalorder %s13, 1
    %p30 = por %p28, %p29
    %p31 = scmp.ne.s32.totalorder %s23, %s26
    %p32 = scmp.eq.s32.totalorder %s13, 0
    %p33 = por %p31, %p32
    %p34 = scmp.ne.s32.totalorder %s23, %s26
    %p35 = scmp.eq.s32.totalorder %s18, 1
    %p36 = por %p34, %p35
    %p37 = scmp.ne.s32.totalorder %s26, %s27
    %p38 = scmp.eq.s32.totalorder %s18, 0
    %p39 = por %p37, %p38
    %p40 = scmp.ne.s32.totalorder %s26, %s27
    %p41 = scmp.eq.s32.totalorder %s19, 1
    %p42 = por %p40, %p41
    %p44 = scmp.ne.s32.totalorder %s27, %s43
    %p45 = scmp.eq.s32.totalorder %s19, 0
    %p46 = por %p44, %p45
    %s48 = sadd.s32 %s47, 1
    %p51 = scmp.eq.s32.totalorder %s13, 1
    %p52 = scmp.ne.s32.totalorder %s47, %s49
    %p53 = scmp.eq.s32.totalorder %s13, 0
    %p54 = por %p52, %p53
    %p55 = scmp.ne.s32.totalorder %s47, %s49
    %p56 = scmp.eq.s32.totalorder %s18, 1
    %p57 = por %p55, %p56
    %p58 = scmp.ne.s32.totalorder %s49, %s50
    %p59 = scmp.eq.s32.totalorder %s18, 0
    %p60 = por %p58, %p59
    %p61 = scmp.ne.s32.totalorder %s49, %s50
    %p62 = scmp.eq.s32.totalorder %s19, 1
    %p63 = por %p61, %p62
    %p65 = scmp.ne.s32.totalorder %s50, %s64
    %p66 = scmp.eq.s32.totalorder %s19, 0
    %p67 = por %p65, %p66
    %s69 = sadd.s32 %s68, 1
    %p72 = scmp.eq.s32.totalorder %s13, 1
    %p73 = scmp.ne.s32.totalorder %s68, %s70
    %p74 = scmp.eq.s32.totalorder %s13, 0
    %p75 = por %p73, %p74
    %p76 = scmp.ne.s32.totalorder %s68, %s70
    %p77 = scmp.eq.s32.totalorder %s18, 1
    %p78 = por %p76, %p77
    %p79 = scmp.ne.s32.totalorder %s70, %s71
    %p80 = scmp.eq.s32.totalorder %s18, 0
    %p81 = por %p79, %p80
    %p82 = scmp.ne.s32.totalorder %s70, %s71
    %p83 = scmp.eq.s32.totalorder %s19, 1
    %p84 = por %p82, %p83
    %p86 = scmp.ne.s32.totalorder %s71, %s85
    %p87 = scmp.eq.s32.totalorder %s19, 0
    %p88 = por %p86, %p87
    %s90 = sadd.s32 %s89, 1
    %p93 = scmp.eq.s32.totalorder %s13, 1
    %p94 = scmp.ne.s32.totalorder %s89, %s91
    %p95 = scmp.eq.s32.totalorder %s13, 0
    %p96 = por %p94, %p95
    %p97 = scmp.ne.s32.totalorder %s89, %s91
    %p98 = scmp.eq.s32.totalorder %s18, 1
    %p99 = por %p97, %p98
    %p100 = scmp.ne.s32.totalorder %s91, %s92
    %p101 = scmp.eq.s32.totalorder %s18, 0
    %p102 = por %p100, %p101
    %p103 = scmp.ne.s32.totalorder %s91, %s92
    %p104 = scmp.eq.s32.totalorder %s19, 1
    %p105 = por %p103, %p104
    %p107 = scmp.ne.s32.totalorder %s92, %s106
    %p108 = scmp.eq.s32.totalorder %s19, 0
    %p109 = por %p107, %p108
    %s111 = sadd.s32 %s110, 1
    %p114 = scmp.eq.s32.totalorder %s13, 1
    %p115 = scmp.ne.s32.totalorder %s110, %s112
    %p116 = scmp.eq.s32.totalorder %s13, 0
    %p117 = por %p115, %p116
    %p118 = scmp.ne.s32.totalorder %s110, %s112
    %p119 = scmp.eq.s32.totalorder %s18, 1
    %p120 = por %p118, %p119
    %p121 = scmp.ne.s32.totalorder %s112, %s113
    %p122 = scmp.eq.s32.totalorder %s18, 0
    %p123 = por %p121, %p122
    %p124 = scmp.ne.s32.totalorder %s112, %s113
    %p125 = scmp.eq.s32.totalorder %s19, 1
    %p126 = por %p124, %p125
    %p128 = scmp.ne.s32.totalorder %s113, %s127
    %p129 = scmp.eq.s32.totalorder %s19, 0
    %p130 = por %p128, %p129
    %s132 = sadd.s32 %s131, 1
    %p135 = scmp.eq.s32.totalorder %s13, 1
    %p136 = scmp.ne.s32.totalorder %s131, %s133
    %p137 = scmp.eq.s32.totalorder %s13, 0
    %p138 = por %p136, %p137
    %p139 = scmp.ne.s32.totalorder %s131, %s133
    %p140 = scmp.eq.s32.totalorder %s18, 1
    %p141 = por %p139, %p140
    %p142 = scmp.ne.s32.totalorder %s133, %s134
    %p143 = scmp.eq.s32.totalorder %s18, 0
    %p144 = por %p142, %p143
    %p145 = scmp.ne.s32.totalorder %s133, %s134
    %p146 = scmp.eq.s32.totalorder %s19, 1
    %p147 = por %p145, %p146
    %p149 = scmp.ne.s32.totalorder %s134, %s148
    %p150 = scmp.eq.s32.totalorder %s19, 0
    %p151 = por %p149, %p150
    %s153 = sadd.s32 %s152, 1
    %p156 = scmp.eq.s32.totalorder %s13, 1
    %p157 = scmp.ne.s32.totalorder %s152, %s154
    %p158 = scmp.eq.s32.totalorder %s13, 0
    %p159 = por %p157, %p158
    %p160 = scmp.ne.s32.totalorder %s152, %s154
    %p161 = scmp.eq.s32.totalorder %s18, 1
    %p162 = por %p160, %p161
    %p163 = scmp.ne.s32.totalorder %s154, %s155
    %p164 = scmp.eq.s32.totalorder %s18, 0
    %p165 = por %p163, %p164
    %p166 = scmp.ne.s32.totalorder %s154, %s155
    %p167 = scmp.eq.s32.totalorder %s19, 1
    %p168 = por %p166, %p167
    %p170 = scmp.ne.s32.totalorder %s155, %s169
    %p171 = scmp.eq.s32.totalorder %s19, 0
    %p172 = por %p170, %p171
    %s173 = ssub.s32 %s13, %s20
    %p174 = scmp.eq.s32.totalorder %s173, 0
    %s176 = sadd.s32 %s175, 1
    %s177 = scalar_select %p174, %s175, %s176
    %p180 = pneg %p174
    %p181 = scmp.eq.s32.totalorder %s13, 1
    %p182 = por %p180, %p181
    %p183 = scmp.ne.s32.totalorder %s175, %s178
    %p184 = scmp.eq.s32.totalorder %s13, 0
    %p185 = por %p183, %p184
    %p186 = scmp.ne.s32.totalorder %s175, %s178
    %p187 = scmp.eq.s32.totalorder %s18, 1
    %p188 = por %p186, %p187
    %p189 = scmp.ne.s32.totalorder %s178, %s179
    %p190 = scmp.eq.s32.totalorder %s18, 0
    %p191 = por %p189, %p190
    %p192 = scmp.ne.s32.totalorder %s178, %s179
    %p193 = scmp.eq.s32.totalorder %s19, 1
    %p194 = por %p192, %p193
    %p196 = scmp.ne.s32.totalorder %s179, %s195
    %p197 = scmp.eq.s32.totalorder %s19, 0
    %p198 = por %p196, %p197
    %p199 = scmp.le.s32.totalorder 1, %s13
    %p200 = scmp.lt.s32.totalorder %s13, 3
    %p201 = pnand %p199, %p200
    %p202 = pneg %p201
    // Predicated region
    $region9: #{qnetwork_forward.1} parent=5 // pred_check
      _
    $region10: #{qnetwork_forward.1} parent=5 // pred_check_branch
      %204 = sbr.rel (%p201) target = $region12
    $region11: #{qnetwork_forward.1} parent=5 // pred_region
      %s205 = ssub.s32 %s13, 1
      // Predicated region
      $region13: #{qnetwork_forward.1} parent=11 // pred_check
        %p206 = pneg %p60
      $region14: #{qnetwork_forward.1} parent=11 // pred_check_branch
        %208 = sbr.rel (%p206) target = $region16
      $region15: #{qnetwork_forward.1} parent=11 // pred_region
        _
      $region16: #{qnetwork_forward.1} parent=11 // pred_fallthru
        _
      // Predicated region
      $region17: #{qnetwork_forward.1} parent=11 // pred_check
        %p209 = pneg %p81
      $region18: #{qnetwork_forward.1} parent=11 // pred_check_branch
        %211 = sbr.rel (%p209) target = $region20
      $region19: #{qnetwork_forward.1} parent=11 // pred_region
        _
      $region20: #{qnetwork_forward.1} parent=11 // pred_fallthru
        _
      // Predicated region
      $region21: #{qnetwork_forward.1} parent=11 // pred_check
        %p212 = pneg %p102
      $region22: #{qnetwork_forward.1} parent=11 // pred_check_branch
        %214 = sbr.rel (%p212) target = $region24
      $region23: #{qnetwork_forward.1} parent=11 // pred_region
        _
      $region24: #{qnetwork_forward.1} parent=11 // pred_fallthru
        _
      // Predicated region
      $region25: #{qnetwork_forward.1} parent=11 // pred_check
        %p215 = pneg %p123
      $region26: #{qnetwork_forward.1} parent=11 // pred_check_branch
        %217 = sbr.rel (%p215) target = $region28
      $region27: #{qnetwork_forward.1} parent=11 // pred_region
        _
      $region28: #{qnetwork_forward.1} parent=11 // pred_fallthru
        _
      // Predicated region
      $region29: #{qnetwork_forward.1} parent=11 // pred_check
        %p218 = pneg %p144
      $region30: #{qnetwork_forward.1} parent=11 // pred_check_branch
        %220 = sbr.rel (%p218) target = $region32
      $region31: #{qnetwork_forward.1} parent=11 // pred_region
        _
      $region32: #{qnetwork_forward.1} parent=11 // pred_fallthru
        _
      // Predicated region
      $region33: #{qnetwork_forward.1} parent=11 // pred_check
        %p221 = pneg %p165
      $region34: #{qnetwork_forward.1} parent=11 // pred_check_branch
        %223 = sbr.rel (%p221) target = $region36
      $region35: #{qnetwork_forward.1} parent=11 // pred_region
        _
      $region36: #{qnetwork_forward.1} parent=11 // pred_fallthru
        _
    $region12: #{qnetwork_forward.1} parent=5 // pred_fallthru
      _
    %p224 = scmp.lt.s32.totalorder %s13, 2
    // Predicated region
    $region37: #{qnetwork_forward.1} parent=5 // pred_check
      %p225 = pneg %p224
    $region38: #{qnetwork_forward.1} parent=5 // pred_check_branch
      %227 = sbr.rel (%p225) target = $region40
    $region39: #{qnetwork_forward.1} parent=5 // pred_region
      // Predicated region
      $region41: #{qnetwork_forward.1} parent=39 // pred_check
        %p228 = pneg %p33
      $region42: #{qnetwork_forward.1} parent=39 // pred_check_branch
        %230 = sbr.rel (%p228) target = $region44
      $region43: #{qnetwork_forward.1} parent=39 // pred_region
        %p231 = scmp.lt.s32.totalorder %s13, 1
        %s232 = scalar_select %p231, %s13, 1
        %s233 = smul.addr %s232, 8
        %s234 = scalar_lea.vmem %s0, %s233
      $region44: #{qnetwork_forward.1} parent=39 // pred_fallthru
        _
    $region40: #{qnetwork_forward.1} parent=5 // pred_fallthru
      _
    %p235 = scmp.le.s32.totalorder 1, %s13
    %p236 = scmp.lt.s32.totalorder %s13, 3
    %p237 = pnand %p235, %p236
    %p238 = pneg %p237
    // Predicated region
    $region45: #{qnetwork_forward.1} parent=5 // pred_check
      _
    $region46: #{qnetwork_forward.1} parent=5 // pred_check_branch
      %240 = sbr.rel (%p237) target = $region48
    $region47: #{qnetwork_forward.1} parent=5 // pred_region
      %s241 = ssub.s32 %s13, 1
      %p242 = scmp.lt.s32.totalorder %s18, 1
      %s243 = scalar_select %p242, %s18, 1
      %s244 = smul.addr %s243, 8
      %s245 = scalar_lea.vmem %s0, %s244
      %p246 = pneg %p39
      %p247 = pneg %p36
      %p248 = pneg %p60
      %p249 = pneg %p57
      %p250 = pneg %p81
      %p251 = pneg %p78
      %p252 = pneg %p102
      %p253 = pneg %p99
      %p254 = pneg %p123
      %p255 = pneg %p120
      %p256 = pneg %p144
      %p257 = pneg %p141
      %p258 = pneg %p165
      %p259 = pneg %p162
      %p260 = pneg %p191
      %p261 = pneg %p188
      %p262 = scmp.lt.s32.totalorder %s18, 1
      %s263 = scalar_select %p262, %s18, 1
      %s264 = smul.addr %s263, 8
      %s265 = scalar_lea.vmem %s7, %s264
      %p266 = scmp.lt.s32.totalorder %s18, 1
      %s267 = scalar_select %p266, %s18, 1
      %s268 = smul.addr %s267, 8
      %s269 = scalar_lea.vmem %s0, %s268
      %p270 = scmp.lt.s32.totalorder %s18, 1
      %s271 = scalar_select %p270, %s18, 1
      %s272 = smul.addr %s271, 8
      %s273 = scalar_lea.vmem %s7, %s272
      %v274 = vld [vmem:[%s269] sm:$0xff]
      %v275 = vld [vmem:[%s1] sm:$0xff]
      %v276 = vld [vmem:[%s2] sm:$0x1]
      %v278 = vperm.slane %v276, 0
      %281 = vset.pattern.permute.xlu0 0
      %282 = vperm.xlu0 %281, %v274
      %v283 = vpop.permute.xlu0 %282
      %v285 = vperm.slane %v275, 0
      %v286 = vmul.f32 %v283, %v285
      %v287 = vadd.f32 %v278, %v286
      %288 = vset.pattern.permute.xlu0 1
      %289 = vperm.xlu0 %288, %v274
      %v290 = vpop.permute.xlu0 %289
      %v292 = vperm.slane %v275, 1
      %v293 = vmul.f32 %v290, %v292
      %v294 = vadd.f32 %v287, %v293
      %295 = vset.pattern.permute.xlu0 2
      %296 = vperm.xlu0 %295, %v274
      %v297 = vpop.permute.xlu0 %296
      %v299 = vperm.slane %v275, 2
      %v300 = vmul.f32 %v297, %v299
      %v301 = vadd.f32 %v294, %v300
      %302 = vset.pattern.permute.xlu0 3
      %303 = vperm.xlu0 %302, %v274
      %v304 = vpop.permute.xlu0 %303
      %v306 = vperm.slane %v275, 3
      %v307 = vmul.f32 %v304, %v306
      %v308 = vadd.f32 %v301, %v307
      %309 = vset.pattern.permute.xlu0 4
      %310 = vperm.xlu0 %309, %v274
      %v311 = vpop.permute.xlu0 %310
      %v313 = vperm.slane %v275, 4
      %v314 = vmul.f32 %v311, %v313
      %v315 = vadd.f32 %v308, %v314
      %316 = vset.pattern.permute.xlu0 5
      %317 = vperm.xlu0 %316, %v274
      %v318 = vpop.permute.xlu0 %317
      %v320 = vperm.slane %v275, 5
      %v321 = vmul.f32 %v318, %v320
      %v322 = vadd.f32 %v315, %v321
      %323 = vset.pattern.permute.xlu0 6
      %324 = vperm.xlu0 %323, %v274
      %v325 = vpop.permute.xlu0 %324
      %v327 = vperm.slane %v275, 6
      %v328 = vmul.f32 %v325, %v327
      %v329 = vadd.f32 %v322, %v328
      %330 = vset.pattern.permute.xlu0 7
      %331 = vperm.xlu0 %330, %v274
      %v332 = vpop.permute.xlu0 %331
      %v334 = vperm.slane %v275, 7
      %v335 = vmul.f32 %v332, %v334
      %v336 = vadd.f32 %v329, %v335
      %v337 = vmax.f32 %v336, 0.0
      %v338 = vpack.c.bf16 %v337, %v337
      %v339 = vld [vmem:[%s3] sm:$0xf]
      %v340 = vld [vmem:[%s3 + $0x4] sm:$0xf]
      %v341 = vld [vmem:[%s3 + $0x8] sm:$0xf]
      %v342 = vld [vmem:[%s3 + $0xc] sm:$0xf]
      %v343 = vld [vmem:[%s3 + $0x10] sm:$0xf]
      %v344 = vld [vmem:[%s3 + $0x14] sm:$0xf]
      %v345 = vld [vmem:[%s3 + $0x18] sm:$0xf]
      %v346 = vld [vmem:[%s3 + $0x1c] sm:$0xf]
      %v347 = vld [vmem:[%s3 + $0x20] sm:$0xf]
      %v348 = vld [vmem:[%s3 + $0x24] sm:$0xf]
      %v349 = vld [vmem:[%s3 + $0x28] sm:$0xf]
      %v350 = vld [vmem:[%s3 + $0x2c] sm:$0xf]
      %v351 = vld [vmem:[%s3 + $0x30] sm:$0xf]
      %v352 = vld [vmem:[%s3 + $0x34] sm:$0xf]
      %v353 = vld [vmem:[%s3 + $0x38] sm:$0xf]
      %v354 = vld [vmem:[%s3 + $0x3c] sm:$0xf]
      %v355 = vld [vmem:[%s4] sm:$0x1]
      %v357 = vperm.slane %v355, 0
      %v375 = vunpack.c.l.b16 %v339
      %v376 = vunpack.c.l.b16 %v340
      %v377 = vunpack.c.l.b16 %v341
      %v378 = vunpack.c.l.b16 %v342
      %v379 = vunpack.c.l.b16 %v343
      %v380 = vunpack.c.l.b16 %v344
      %v381 = vunpack.c.l.b16 %v345
      %v382 = vunpack.c.l.b16 %v346
      %v383 = vunpack.c.l.b16 %v347
      %v384 = vunpack.c.l.b16 %v348
      %v385 = vunpack.c.l.b16 %v349
      %v386 = vunpack.c.l.b16 %v350
      %v387 = vunpack.c.l.b16 %v351
      %v388 = vunpack.c.l.b16 %v352
      %v389 = vunpack.c.l.b16 %v353
      %v390 = vunpack.c.l.b16 %v354
      %v391 = vpack.c.b16 %v376, %v375
      %v392 = vpack.c.b16 %v378, %v377
      %v393 = vpack.c.b16 %v380, %v379
      %v394 = vpack.c.b16 %v382, %v381
      %v395 = vpack.c.b16 %v384, %v383
      %v396 = vpack.c.b16 %v386, %v385
      %v397 = vpack.c.b16 %v388, %v387
      %v398 = vpack.c.b16 %v390, %v389
      %407 = vmatpush.bf16.msra.mxu0 %v398
      %408 = vmatpush.bf16.msra.mxu0 %v397
      %409 = vmatpush.bf16.msra.mxu0 %v396
      %410 = vmatpush.bf16.msra.mxu0 %v395
      %411 = vmatpush.bf16.msra.mxu0 %v394
      %412 = vmatpush.bf16.msra.mxu0 %v393
      %413 = vmatpush.bf16.msra.mxu0 %v392
      %414 = vmatpush.bf16.msra.mxu0 %v391
      %415 = vmatmul.bf16.gmra.mxu0 %v338
      %v416 = vpop.f32.mrf.mxu0
      %v417 = vadd.f32 %v357, %v416
      %v418 = vpop.f32.mrf.mxu0
      %419 = vdwg.mxu0
      %v420 = vmax.f32 %v417, 0.0
      %v421 = vpack.c.bf16 %v420, %v420
      %v422 = vld [vmem:[%s5] sm:$0xf]
      %v423 = vld [vmem:[%s5 + $0x4] sm:$0xf]
      %v424 = vld [vmem:[%s5 + $0x8] sm:$0xf]
      %v425 = vld [vmem:[%s5 + $0xc] sm:$0xf]
      %v426 = vld [vmem:[%s5 + $0x10] sm:$0xf]
      %v427 = vld [vmem:[%s5 + $0x14] sm:$0xf]
      %v428 = vld [vmem:[%s5 + $0x18] sm:$0xf]
      %v429 = vld [vmem:[%s5 + $0x1c] sm:$0xf]
      %v430 = vld [vmem:[%s5 + $0x20] sm:$0xf]
      %v431 = vld [vmem:[%s5 + $0x24] sm:$0xf]
      %v432 = vld [vmem:[%s5 + $0x28] sm:$0xf]
      %v433 = vld [vmem:[%s5 + $0x2c] sm:$0xf]
      %v434 = vld [vmem:[%s5 + $0x30] sm:$0xf]
      %v435 = vld [vmem:[%s5 + $0x34] sm:$0xf]
      %v436 = vld [vmem:[%s5 + $0x38] sm:$0xf]
      %v437 = vld [vmem:[%s5 + $0x3c] sm:$0xf]
      %v438 = vld [vmem:[%s6] sm:$0x1]
      %v440 = vperm.slane %v438, 0
      %v458 = vunpack.c.l.b16 %v422
      %v459 = vunpack.c.l.b16 %v423
      %v460 = vunpack.c.l.b16 %v424
      %v461 = vunpack.c.l.b16 %v425
      %v462 = vunpack.c.l.b16 %v426
      %v463 = vunpack.c.l.b16 %v427
      %v464 = vunpack.c.l.b16 %v428
      %v465 = vunpack.c.l.b16 %v429
      %v466 = vunpack.c.l.b16 %v430
      %v467 = vunpack.c.l.b16 %v431
      %v468 = vunpack.c.l.b16 %v432
      %v469 = vunpack.c.l.b16 %v433
      %v470 = vunpack.c.l.b16 %v434
      %v471 = vunpack.c.l.b16 %v435
      %v472 = vunpack.c.l.b16 %v436
      %v473 = vunpack.c.l.b16 %v437
      %v474 = vpack.c.b16 %v459, %v458
      %v475 = vpack.c.b16 %v461, %v460
      %v476 = vpack.c.b16 %v463, %v462
      %v477 = vpack.c.b16 %v465, %v464
      %v478 = vpack.c.b16 %v467, %v466
      %v479 = vpack.c.b16 %v469, %v468
      %v480 = vpack.c.b16 %v471, %v470
      %v481 = vpack.c.b16 %v473, %v472
      %490 = vmatpush.bf16.msra.mxu0 %v481
      %491 = vmatpush.bf16.msra.mxu0 %v480
      %492 = vmatpush.bf16.msra.mxu0 %v479
      %493 = vmatpush.bf16.msra.mxu0 %v478
      %494 = vmatpush.bf16.msra.mxu0 %v477
      %495 = vmatpush.bf16.msra.mxu0 %v476
      %496 = vmatpush.bf16.msra.mxu0 %v475
      %497 = vmatpush.bf16.msra.mxu0 %v474
      %498 = vmatmul.bf16.gmra.mxu0 %v421
      %v499 = vpop.f32.mrf.mxu0
      %v500 = vadd.f32 %v440, %v499
      %v501 = vpop.f32.mrf.mxu0
      %502 = vdwg.mxu0
      %vm503 = vcmask 31744
      %504 = vst.msk [vmem:[%s273] sm:$0xff] %vm503, %v500
      %p505 = scmp.lt.s32.totalorder %s18, 1
      %s506 = scalar_select %p505, %s18, 1
      %s507 = smul.addr %s506, 8
      %s508 = scalar_lea.vmem %s7, %s507
      // Predicated region
      $region49: #{qnetwork_forward.1} parent=47 // pred_check
        %p509 = pneg %p188
      $region50: #{qnetwork_forward.1} parent=47 // pred_check_branch
        %511 = sbr.rel (%p509) target = $region52
      $region51: #{qnetwork_forward.1} parent=47 // pred_region
        _
      $region52: #{qnetwork_forward.1} parent=47 // pred_fallthru
        _
    $region48: #{qnetwork_forward.1} parent=5 // pred_fallthru
      _
    %p512 = scmp.le.s32.totalorder 2, %s13
    // Predicated region
    $region53: #{qnetwork_forward.1} parent=5 // pred_check
      %p513 = pneg %p512
    $region54: #{qnetwork_forward.1} parent=5 // pred_check_branch
      %515 = sbr.rel (%p513) target = $region56
    $region55: #{qnetwork_forward.1} parent=5 // pred_region
      %s516 = ssub.s32 %s13, 2
      // Predicated region
      $region57: #{qnetwork_forward.1} parent=55 // pred_check
        %p517 = pneg %p194
      $region58: #{qnetwork_forward.1} parent=55 // pred_check_branch
        %519 = sbr.rel (%p517) target = $region60
      $region59: #{qnetwork_forward.1} parent=55 // pred_region
        %p520 = scmp.lt.s32.totalorder %s19, 1
        %s521 = scalar_select %p520, %s19, 1
        %s522 = smul.addr %s521, 8
        %s523 = scalar_lea.vmem %s7, %s522
      $region60: #{qnetwork_forward.1} parent=55 // pred_fallthru
        _
    $region56: #{qnetwork_forward.1} parent=5 // pred_fallthru
      _
  $region6: #{qnetwork_forward.1} parent=0 // loop_footer
    %s17 = sadd.s32 1, %s13
  $region7: #{qnetwork_forward.1} parent=0 // loop_footer_branch
    %12 = sbr.rel target = $region3
  $region8: #{qnetwork_forward.1} parent=0 // loop_exit
    _

</llo_original>
